<compile_context>
chip_gen: v6e
topology: v6e:2x2x1
jax: 0.10.0
libtpu: 0.0.40
codegen_flags: <defaults>
</compile_context>

<pallas_src>
import jax
import jax.numpy as jnp
from jax.experimental import pallas as pl
from jax.experimental.pallas import tpu as pltpu

STATE_SIZE = 4
HIDDEN_SIZE = 32
ACTION_SIZE = 2  # kernel exploits ACTION_SIZE == 2 (sigmoid form of softmax)

# ---- packed parameter slab layout: shape [_SLAB_ROWS, 1], f32 ----
_W1_OFF = 0                                  # rows [s*H, (s+1)*H) hold W1[s, :]
_B1_OFF = STATE_SIZE * HIDDEN_SIZE           # rows [.., ..+H): b1
_WD_OFF = _B1_OFF + HIDDEN_SIZE              # rows [.., ..+H): W2[:,1] - W2[:,0]
_BD_OFF = _WD_OFF + HIDDEN_SIZE              # 1 row: b2[1] - b2[0]
_SLAB_ROWS = ((_BD_OFF + 1 + 7) // 8) * 8    # pad to a multiple of 8 sublanes


def pack_params(w1, b1, w2, b2):
    """Pack fc1/fc2 params into one [SLAB_ROWS, 1] f32 slab (single DMA).

    w1: [S, H] (transpose of torch fc1.weight), b1: [H]
    w2: [H, A] (transpose of torch fc2.weight), b2: [A]   (A must be 2)
    """
    w1 = jnp.asarray(w1, jnp.float32)
    b1 = jnp.asarray(b1, jnp.float32).reshape(-1)
    w2 = jnp.asarray(w2, jnp.float32)
    b2 = jnp.asarray(b2, jnp.float32).reshape(-1)
    assert w1.shape == (STATE_SIZE, HIDDEN_SIZE)
    assert b1.shape == (HIDDEN_SIZE,)
    assert w2.shape == (HIDDEN_SIZE, ACTION_SIZE)
    assert b2.shape == (ACTION_SIZE,)
    slab = jnp.zeros((_SLAB_ROWS,), jnp.float32)
    slab = slab.at[_W1_OFF:_W1_OFF + STATE_SIZE * HIDDEN_SIZE].set(w1.reshape(-1))
    slab = slab.at[_B1_OFF:_B1_OFF + HIDDEN_SIZE].set(b1)
    slab = slab.at[_WD_OFF:_WD_OFF + HIDDEN_SIZE].set(w2[:, 1] - w2[:, 0])
    slab = slab.at[_BD_OFF].set(b2[1] - b2[0])
    return slab.reshape(_SLAB_ROWS, 1)


def policy_kernel(slab_ref, xt_ref, out_ref):
    S, H = STATE_SIZE, HIDDEN_SIZE

    # fc1 + ReLU:  h[h, b] = b1[h] + sum_s W1[s, h] * x[s, b]   (pure VPU, unrolled)
    acc = slab_ref[_B1_OFF:_B1_OFF + H, :]                            # [H, 1] bias
    for s in range(S):
        w_col = slab_ref[_W1_OFF + s * H:_W1_OFF + (s + 1) * H, :]    # [H, 1]
        acc = acc + w_col * xt_ref[s:s + 1, :]                        # -> [H, B]
    h = jnp.maximum(acc, 0.0)

    # fc2 + softmax over 2 classes: softmax(l)[1] = sigmoid(l1 - l0)
    wdiff = slab_ref[_WD_OFF:_WD_OFF + H, :]                          # [H, 1]
    bdiff = slab_ref[_BD_OFF:_BD_OFF + 1, :]                          # [1, 1]
    z = jnp.sum(wdiff * h, axis=0, keepdims=True) + bdiff             # [1, B]

    # numerically stable sigmoid
    ez = jnp.exp(-jnp.abs(z))                                         # EUP
    p_max = pl.reciprocal(1.0 + ez, approx=True)                      # prob of larger logit
    p1 = jnp.where(z >= 0.0, p_max, 1.0 - p_max)                      # softmax[:, 1]

    out_ref[0:1, :] = 1.0 - p1
    out_ref[1:2, :] = p1


def policy_forward(x, slab):
    """x: [B, STATE_SIZE] f32, slab: packed params -> probs [B, ACTION_SIZE] f32."""
    B = x.shape[0]
    bpad = ((B + 127) // 128) * 128  # lane-dense padded batch
    xt = jnp.zeros((STATE_SIZE, bpad), jnp.float32).at[:, :B].set(
        jnp.asarray(x, jnp.float32).T)
    # NOTE(v7x): for very large rollout batches, add a lane-tiled grid axis over
    # bpad marked dimension_semantics=("parallel",) to split batch across the two
    # TensorCores; at small B a single un-pipelined invocation is cheapest.
    probs_t = pl.pallas_call(
        policy_kernel,
        out_shape=jax.ShapeDtypeStruct((ACTION_SIZE, bpad), jnp.float32),
        in_specs=[
            pl.BlockSpec(memory_space=pltpu.MemorySpace.VMEM),
            pl.BlockSpec(memory_space=pltpu.MemorySpace.VMEM),
        ],
        out_specs=pl.BlockSpec(memory_space=pltpu.MemorySpace.VMEM),
    )(slab, xt)
    return probs_t[:, :B].T


def init_params(key, state_size=STATE_SIZE, hidden_size=HIDDEN_SIZE,
                action_size=ACTION_SIZE):
    """Deterministic init mimicking PyTorch Linear's U(-1/sqrt(fan_in), +...)."""
    k1, k2, k3, k4 = jax.random.split(key, 4)
    bound1 = 1.0 / jnp.sqrt(state_size)
    bound2 = 1.0 / jnp.sqrt(hidden_size)
    # Weights stored transposed relative to PyTorch: [in, out]
    w1 = jax.random.uniform(k1, (state_size, hidden_size), jnp.float32,
                            -bound1, bound1)
    b1 = jax.random.uniform(k2, (hidden_size,), jnp.float32, -bound1, bound1)
    w2 = jax.random.uniform(k3, (hidden_size, action_size), jnp.float32,
                            -bound2, bound2)
    b2 = jax.random.uniform(k4, (action_size,), jnp.float32, -bound2, bound2)
    return w1, b1, w2, b2


if __name__ == "__main__":
    key = jax.random.PRNGKey(0)
    k_x, k_p = jax.random.split(key)

    B = 2
    x = jax.random.normal(k_x, (B, STATE_SIZE), jnp.float32)
    w1, b1, w2, b2 = init_params(k_p)

    # Pack once; keep as a persistent device array across calls.
    slab = pack_params(w1, b1, w2, b2)

    probs = jax.block_until_ready(policy_forward(x, slab))

    # Pure-JAX reference
    h_ref = jnp.maximum(x @ w1 + b1, 0.0)
    logits_ref = h_ref @ w2 + b2
    probs_ref = jax.nn.softmax(logits_ref, axis=1)

    assert probs.shape == (B, ACTION_SIZE)
    # approx=True reciprocal -> ~2^-12 relative error budget
    assert jnp.allclose(probs, probs_ref, atol=1e-3, rtol=1e-3)
    assert jnp.allclose(jnp.sum(probs, axis=1), 1.0, atol=1e-5)

    print("KERNEL_OK")
</pallas_src>

<mosaic_0001>
module attributes {stable_mosaic.version = 11 : i64} {
  func.func @policy_kernel(%arg0: memref<200x1xf32, #tpu.memory_space<vmem>>, %arg1: memref<4x128xf32, #tpu.memory_space<vmem>>, %arg2: memref<2x128xf32, #tpu.memory_space<vmem>>) attributes {dimension_semantics = [], scalar_prefetch = 0 : i64, scratch_operands = 0 : i64, tpu.core_type = #tpu.core_type<tc>} {
    %c128 = arith.constant 128 : index
    %c0 = arith.constant 0 : index
    %0 = vector.load %arg0[%c128, %c0] : memref<200x1xf32, #tpu.memory_space<vmem>>, vector<32x1xf32>
    %c0_0 = arith.constant 0 : index
    %c0_1 = arith.constant 0 : index
    %1 = vector.load %arg0[%c0_0, %c0_1] : memref<200x1xf32, #tpu.memory_space<vmem>>, vector<32x1xf32>
    %c0_2 = arith.constant 0 : index
    %c0_3 = arith.constant 0 : index
    %2 = vector.load %arg1[%c0_2, %c0_3] : memref<4x128xf32, #tpu.memory_space<vmem>>, vector<1x128xf32>
    %3 = vector.broadcast %1 : vector<32x1xf32> to vector<32x128xf32>
    %4 = vector.broadcast %2 : vector<1x128xf32> to vector<32x128xf32>
    %5 = arith.mulf %3, %4 : vector<32x128xf32>
    %6 = vector.broadcast %0 : vector<32x1xf32> to vector<32x128xf32>
    %7 = arith.addf %6, %5 : vector<32x128xf32>
    %c32 = arith.constant 32 : index
    %c0_4 = arith.constant 0 : index
    %8 = vector.load %arg0[%c32, %c0_4] : memref<200x1xf32, #tpu.memory_space<vmem>>, vector<32x1xf32>
    %c1 = arith.constant 1 : index
    %c0_5 = arith.constant 0 : index
    %9 = vector.load %arg1[%c1, %c0_5] : memref<4x128xf32, #tpu.memory_space<vmem>>, vector<1x128xf32>
    %10 = vector.broadcast %8 : vector<32x1xf32> to vector<32x128xf32>
    %11 = vector.broadcast %9 : vector<1x128xf32> to vector<32x128xf32>
    %12 = arith.mulf %10, %11 : vector<32x128xf32>
    %13 = arith.addf %7, %12 : vector<32x128xf32>
    %c64 = arith.constant 64 : index
    %c0_6 = arith.constant 0 : index
    %14 = vector.load %arg0[%c64, %c0_6] : memref<200x1xf32, #tpu.memory_space<vmem>>, vector<32x1xf32>
    %c2 = arith.constant 2 : index
    %c0_7 = arith.constant 0 : index
    %15 = vector.load %arg1[%c2, %c0_7] : memref<4x128xf32, #tpu.memory_space<vmem>>, vector<1x128xf32>
    %16 = vector.broadcast %14 : vector<32x1xf32> to vector<32x128xf32>
    %17 = vector.broadcast %15 : vector<1x128xf32> to vector<32x128xf32>
    %18 = arith.mulf %16, %17 : vector<32x128xf32>
    %19 = arith.addf %13, %18 : vector<32x128xf32>
    %c96 = arith.constant 96 : index
    %c0_8 = arith.constant 0 : index
    %20 = vector.load %arg0[%c96, %c0_8] : memref<200x1xf32, #tpu.memory_space<vmem>>, vector<32x1xf32>
    %c3 = arith.constant 3 : index
    %c0_9 = arith.constant 0 : index
    %21 = vector.load %arg1[%c3, %c0_9] : memref<4x128xf32, #tpu.memory_space<vmem>>, vector<1x128xf32>
    %22 = vector.broadcast %20 : vector<32x1xf32> to vector<32x128xf32>
    %23 = vector.broadcast %21 : vector<1x128xf32> to vector<32x128xf32>
    %24 = arith.mulf %22, %23 : vector<32x128xf32>
    %25 = arith.addf %19, %24 : vector<32x128xf32>
    %cst = arith.constant 0.000000e+00 : f32
    %26 = vector.broadcast %cst : f32 to vector<32x128xf32>
    %27 = arith.maximumf %25, %26 : vector<32x128xf32>
    %c160 = arith.constant 160 : index
    %c0_10 = arith.constant 0 : index
    %28 = vector.load %arg0[%c160, %c0_10] : memref<200x1xf32, #tpu.memory_space<vmem>>, vector<32x1xf32>
    %c192 = arith.constant 192 : index
    %c0_11 = arith.constant 0 : index
    %29 = vector.load %arg0[%c192, %c0_11] : memref<200x1xf32, #tpu.memory_space<vmem>>, vector<1x1xf32>
    %30 = vector.broadcast %28 : vector<32x1xf32> to vector<32x128xf32>
    %31 = arith.mulf %30, %27 : vector<32x128xf32>
    %cst_12 = arith.constant dense<0.000000e+00> : vector<128xf32>
    %32 = vector.multi_reduction <add>, %31, %cst_12 [0] : vector<32x128xf32> to vector<128xf32>
    %33 = vector.shape_cast %32 : vector<128xf32> to vector<1x128xf32>
    %34 = vector.broadcast %29 : vector<1x1xf32> to vector<1x128xf32>
    %35 = arith.addf %33, %34 : vector<1x128xf32>
    %36 = math.absf %35 : vector<1x128xf32>
    %cst_13 = arith.constant 0.000000e+00 : f32
    %37 = vector.broadcast %cst_13 : f32 to vector<1x128xf32>
    %38 = arith.subf %37, %36 : vector<1x128xf32>
    %39 = math.exp %38 : vector<1x128xf32>
    %cst_14 = arith.constant 1.000000e+00 : f32
    %40 = vector.broadcast %cst_14 : f32 to vector<1x128xf32>
    %41 = arith.addf %40, %39 : vector<1x128xf32>
    %42 = tpu.reciprocal %41 {approx = true} : vector<1x128xf32> -> vector<1x128xf32>
    %cst_15 = arith.constant 0.000000e+00 : f32
    %43 = vector.broadcast %cst_15 : f32 to vector<1x128xf32>
    %44 = arith.cmpf oge, %35, %43 : vector<1x128xf32>
    %cst_16 = arith.constant 1.000000e+00 : f32
    %45 = vector.broadcast %cst_16 : f32 to vector<1x128xf32>
    %46 = arith.subf %45, %42 : vector<1x128xf32>
    %47 = arith.select %44, %42, %46 : vector<1x128xi1>, vector<1x128xf32>
    %cst_17 = arith.constant 1.000000e+00 : f32
    %48 = vector.broadcast %cst_17 : f32 to vector<1x128xf32>
    %49 = arith.subf %48, %47 : vector<1x128xf32>
    %c0_18 = arith.constant 0 : index
    %c0_19 = arith.constant 0 : index
    %50 = vector.load %arg2[%c0_18, %c0_19] : memref<2x128xf32, #tpu.memory_space<vmem>>, vector<1x128xf32>
    tpu.vector_store %arg2[%c0_18, %c0_19], %49 {strides = array<i32>} : memref<2x128xf32, #tpu.memory_space<vmem>>, vector<1x128xf32>,
    %c1_20 = arith.constant 1 : index
    %c0_21 = arith.constant 0 : index
    %51 = vector.load %arg2[%c1_20, %c0_21] : memref<2x128xf32, #tpu.memory_space<vmem>>, vector<1x128xf32>
    tpu.vector_store %arg2[%c1_20, %c0_21], %47 {strides = array<i32>} : memref<2x128xf32, #tpu.memory_space<vmem>>, vector<1x128xf32>,
    return
  }
}

</mosaic_0001>

<llo_original>
// kernel: tpu_custom_call.1
$region0: #{tpu_custom_call.1}
  #allocation0 [shape = 'u32[]', space=smem, size = 0x4, offset = 0x4, fixed_abs, tag = 'smem constant byte address 0x4 - core index']
  #allocation1 [shape = 'u32[144,128]{1,0:T(1,128)}', space=vmem, size = 0x12000, scoped, tag = 'internal scratch']
  %s0 = inlined_call_operand.vmem [shape: f32[200,1], index: 0, kind: input, shape index: {}]
  %s1 = inlined_call_operand.vmem [shape: f32[4,128], index: 1, kind: input, shape index: {}]
  %s2 = inlined_call_operand.hbm [shape: f32[2,128], index: 2, kind: output, shape index: {}]
  %s3 = sld [smem:[#allocation0]]
  $region18: #{tpu_custom_call.1} parent=0
    _
  %s5 = ssub.s32 1, %s3
  %s6 = scalar_select 0, %s5, %s3
  $region1: #{tpu_custom_call.1} parent=0
    #allocation2 [shape = 'u8[1024]{0}', space=vmem, size = 0x400, scoped, tag = 'output window, operand 0, single buffered']
    #allocation3 [shape = 's32[1]{0}', space=sflag, size = 0x4, scoped, tag = 'scoped memory for tpu_custom_call.1']
    %7 = vsyncpa [#allocation3], 0
    // Predicated region
    $region2: #{tpu_custom_call.1} parent=1 // pred_check
      _
    $region3: #{tpu_custom_call.1} parent=1 // pred_check_branch
      %9 = sbr.rel (0) target = $region5
    $region4: #{tpu_custom_call.1} parent=1 // pred_region
      _
    $region5: #{tpu_custom_call.1} parent=1 // pred_fallthru
      _
    // Predicated region
    $region6: #{tpu_custom_call.1} parent=1 // pred_check
      _
    $region7: #{tpu_custom_call.1} parent=1 // pred_check_branch
      %11 = sbr.rel (0) target = $region9
    $region8: #{tpu_custom_call.1} parent=1 // pred_region
      _
    $region9: #{tpu_custom_call.1} parent=1 // pred_fallthru
      _
    %v12 = vld [vmem:[%s0 + $0x80] sm:$0xff]
    %v13 = vld [vmem:[%s0 + $0x88] sm:$0xff]
    %v14 = vld [vmem:[%s0 + $0x90] sm:$0xff]
    %v15 = vld [vmem:[%s0 + $0x98] sm:$0xff]
    %v16 = vld [vmem:[%s0] sm:$0xff]
    %v17 = vld [vmem:[%s0 + $0x8] sm:$0xff]
    %v18 = vld [vmem:[%s0 + $0x10] sm:$0xff]
    %v19 = vld [vmem:[%s0 + $0x18] sm:$0xff]
    %v20 = vld [vmem:[%s1] sm:$0x1]
    %22 = vset.pattern.permute.xlu0 0
    %23 = vperm.xlu0 %22, %v16
    %v24 = vpop.permute.xlu0 %23
    %27 = vset.pattern.permute.xlu0 0
    %28 = vperm.xlu0 %27, %v17
    %v29 = vpop.permute.xlu0 %28
    %32 = vset.pattern.permute.xlu0 0
    %33 = vperm.xlu0 %32, %v18
    %v34 = vpop.permute.xlu0 %33
    %37 = vset.pattern.permute.xlu0 0
    %38 = vperm.xlu0 %37, %v19
    %v39 = vpop.permute.xlu0 %38
    %v41 = vlaneseq
    %v42 = vshrl.u32 %v41, 7
    %v43 = vsub.s32 0, %v42
    %v44 = vrot.slane %v20, %v43
    %v45 = vmul.f32 %v24, %v44
    %v46 = vmul.f32 %v29, %v44
    %v47 = vmul.f32 %v34, %v44
    %v48 = vmul.f32 %v39, %v44
    %50 = vset.pattern.permute.xlu0 0
    %51 = vperm.xlu0 %50, %v12
    %v52 = vpop.permute.xlu0 %51
    %55 = vset.pattern.permute.xlu0 0
    %56 = vperm.xlu0 %55, %v13
    %v57 = vpop.permute.xlu0 %56
    %60 = vset.pattern.permute.xlu0 0
    %61 = vperm.xlu0 %60, %v14
    %v62 = vpop.permute.xlu0 %61
    %65 = vset.pattern.permute.xlu0 0
    %66 = vperm.xlu0 %65, %v15
    %v67 = vpop.permute.xlu0 %66
    %v69 = vadd.f32 %v52, %v45
    %v70 = vadd.f32 %v57, %v46
    %v71 = vadd.f32 %v62, %v47
    %v72 = vadd.f32 %v67, %v48
    %v73 = vld [vmem:[%s0 + $0x20] sm:$0xff]
    %v74 = vld [vmem:[%s0 + $0x28] sm:$0xff]
    %v75 = vld [vmem:[%s0 + $0x30] sm:$0xff]
    %v76 = vld [vmem:[%s0 + $0x38] sm:$0xff]
    %v77 = vld [vmem:[%s1 + $0x1] sm:$0x1]
    %79 = vset.pattern.permute.xlu0 0
    %80 = vperm.xlu0 %79, %v73
    %v81 = vpop.permute.xlu0 %80
    %84 = vset.pattern.permute.xlu0 0
    %85 = vperm.xlu0 %84, %v74
    %v86 = vpop.permute.xlu0 %85
    %89 = vset.pattern.permute.xlu0 0
    %90 = vperm.xlu0 %89, %v75
    %v91 = vpop.permute.xlu0 %90
    %94 = vset.pattern.permute.xlu0 0
    %95 = vperm.xlu0 %94, %v76
    %v96 = vpop.permute.xlu0 %95
    %v98 = vlaneseq
    %v99 = vshrl.u32 %v98, 7
    %v100 = vsub.s32 0, %v99
    %v101 = vrot.slane %v77, %v100
    %v102 = vmul.f32 %v81, %v101
    %v103 = vmul.f32 %v86, %v101
    %v104 = vmul.f32 %v91, %v101
    %v105 = vmul.f32 %v96, %v101
    %v106 = vadd.f32 %v69, %v102
    %v107 = vadd.f32 %v70, %v103
    %v108 = vadd.f32 %v71, %v104
    %v109 = vadd.f32 %v72, %v105
    %v110 = vld [vmem:[%s0 + $0x40] sm:$0xff]
    %v111 = vld [vmem:[%s0 + $0x48] sm:$0xff]
    %v112 = vld [vmem:[%s0 + $0x50] sm:$0xff]
    %v113 = vld [vmem:[%s0 + $0x58] sm:$0xff]
    %v114 = vld [vmem:[%s1 + $0x2] sm:$0x1]
    %116 = vset.pattern.permute.xlu0 0
    %117 = vperm.xlu0 %116, %v110
    %v118 = vpop.permute.xlu0 %117
    %121 = vset.pattern.permute.xlu0 0
    %122 = vperm.xlu0 %121, %v111
    %v123 = vpop.permute.xlu0 %122
    %126 = vset.pattern.permute.xlu0 0
    %127 = vperm.xlu0 %126, %v112
    %v128 = vpop.permute.xlu0 %127
    %131 = vset.pattern.permute.xlu0 0
    %132 = vperm.xlu0 %131, %v113
    %v133 = vpop.permute.xlu0 %132
    %v135 = vlaneseq
    %v136 = vshrl.u32 %v135, 7
    %v137 = vsub.s32 0, %v136
    %v138 = vrot.slane %v114, %v137
    %v139 = vmul.f32 %v118, %v138
    %v140 = vmul.f32 %v123, %v138
    %v141 = vmul.f32 %v128, %v138
    %v142 = vmul.f32 %v133, %v138
    %v143 = vadd.f32 %v106, %v139
    %v144 = vadd.f32 %v107, %v140
    %v145 = vadd.f32 %v108, %v141
    %v146 = vadd.f32 %v109, %v142
    %v147 = vld [vmem:[%s0 + $0x60] sm:$0xff]
    %v148 = vld [vmem:[%s0 + $0x68] sm:$0xff]
    %v149 = vld [vmem:[%s0 + $0x70] sm:$0xff]
    %v150 = vld [vmem:[%s0 + $0x78] sm:$0xff]
    %v151 = vld [vmem:[%s1 + $0x3] sm:$0x1]
    %153 = vset.pattern.permute.xlu0 0
    %154 = vperm.xlu0 %153, %v147
    %v155 = vpop.permute.xlu0 %154
    %158 = vset.pattern.permute.xlu0 0
    %159 = vperm.xlu0 %158, %v148
    %v160 = vpop.permute.xlu0 %159
    %163 = vset.pattern.permute.xlu0 0
    %164 = vperm.xlu0 %163, %v149
    %v165 = vpop.permute.xlu0 %164
    %168 = vset.pattern.permute.xlu0 0
    %169 = vperm.xlu0 %168, %v150
    %v170 = vpop.permute.xlu0 %169
    %v172 = vlaneseq
    %v173 = vshrl.u32 %v172, 7
    %v174 = vsub.s32 0, %v173
    %v175 = vrot.slane %v151, %v174
    %v176 = vmul.f32 %v155, %v175
    %v177 = vmul.f32 %v160, %v175
    %v178 = vmul.f32 %v165, %v175
    %v179 = vmul.f32 %v170, %v175
    %v180 = vadd.f32 %v143, %v176
    %v181 = vadd.f32 %v144, %v177
    %v182 = vadd.f32 %v145, %v178
    %v183 = vadd.f32 %v146, %v179
    %v184 = vmax.f32 %v180, 0.0
    %v185 = vmax.f32 %v181, 0.0
    %v186 = vmax.f32 %v182, 0.0
    %v187 = vmax.f32 %v183, 0.0
    %v188 = vld [vmem:[%s0 + $0xa0] sm:$0xff]
    %v189 = vld [vmem:[%s0 + $0xa8] sm:$0xff]
    %v190 = vld [vmem:[%s0 + $0xb0] sm:$0xff]
    %v191 = vld [vmem:[%s0 + $0xb8] sm:$0xff]
    %v192 = vld [vmem:[%s0 + $0xc0] sm:$0x1]
    %194 = vset.pattern.permute.xlu0 0
    %195 = vperm.xlu0 %194, %v188
    %v196 = vpop.permute.xlu0 %195
    %199 = vset.pattern.permute.xlu0 0
    %200 = vperm.xlu0 %199, %v189
    %v201 = vpop.permute.xlu0 %200
    %204 = vset.pattern.permute.xlu0 0
    %205 = vperm.xlu0 %204, %v190
    %v206 = vpop.permute.xlu0 %205
    %209 = vset.pattern.permute.xlu0 0
    %210 = vperm.xlu0 %209, %v191
    %v211 = vpop.permute.xlu0 %210
    %v213 = vmul.f32 %v196, %v184
    %v214 = vmul.f32 %v201, %v185
    %v215 = vmul.f32 %v206, %v186
    %v216 = vmul.f32 %v211, %v187
    %v217 = vadd.f32 %v213, %v214
    %v218 = vadd.f32 %v217, %v215
    %v219 = vadd.f32 %v218, %v216
    %v220 = vrot.slane %v219, 4
    %v221 = vadd.f32 %v219, %v220
    %v222 = vrot.slane %v221, 2
    %v223 = vadd.f32 %v221, %v222
    %v224 = vrot.slane %v223, 1
    %v225 = vadd.f32 %v223, %v224
    %227 = vset.pattern.permute.xlu0 0
    %228 = vperm.xlu0 %227, %v192
    %v229 = vpop.permute.xlu0 %228
    %v231 = vadd.f32 %v225, %v229
    %v232 = vand.u32 2147483647, %v231
    %v233 = vsub.f32 0.0, %v232
    %v234 = vmul.f32 %v233, 1.442695
    %v235 = vpow.pop %v234
    %v236 = vadd.f32 %v235, 1.0
    %v237 = vrcp.pop %v236
    %vm238 = vcmp.ge.f32.partialorder %v231, 0.0
    %v239 = vsub.f32 1.0, %v237
    %v240 = vsel %vm238, %v237, %v239
    %v241 = vsub.f32 1.0, %v240
    %242 = vst [vmem:[#allocation2] sm:$0x1] %v241
    %243 = vst [vmem:[#allocation2 + $0x1] sm:$0x1] %v240
    // Predicated region
    $region10: #{tpu_custom_call.1} parent=1 // pred_check
      _
    $region11: #{tpu_custom_call.1} parent=1 // pred_check_branch
      %245 = sbr.rel (0) target = $region13
    $region12: #{tpu_custom_call.1} parent=1 // pred_region
      %s247 = ssub.s32 32, 32
      %248 = vsyncadd [#allocation3], %s247
      %s250 = sshll.u32 [#allocation2], 4
      %s251 = int_to_ptr.vmem [resolvable:$true] %s250
      %253 = dma.vmem_to_hbm [thread:$0]  %s251, 32, %s2, [#allocation3]
    $region13: #{tpu_custom_call.1} parent=1 // pred_fallthru
      _
    // Predicated region
    $region14: #{tpu_custom_call.1} parent=1 // pred_check
      _
    $region15: #{tpu_custom_call.1} parent=1 // pred_check_branch
      %255 = sbr.rel (0) target = $region17
    $region16: #{tpu_custom_call.1} parent=1 // pred_region
      %256 = dma.done [#allocation3], 32
    $region17: #{tpu_custom_call.1} parent=1 // pred_fallthru
      _
    %257 = vsyncpa [#allocation3], 1

</llo_original>
